<compile_context>
chip_gen: v5e
topology: v5e:2x2
jax: 0.10.0
libtpu: 0.0.40
codegen_flags: <defaults>
</compile_context>

<pallas_src>
import functools

import jax
import jax.numpy as jnp
from jax.experimental import pallas as pl
from jax.experimental.pallas import tpu as pltpu

STATE_DIM = 20
HIDDEN = 20
NUM_PRIM = 19
PAD = 128  # lane width


def _policy_kernel(x_ref, w1_ref, b1_ref, w2_ref, b2_ref, w3_ref, b3_ref, out_ref):
    # x arrives unpadded: (tile_b, STATE_DIM). The K=20 contraction is masked
    # by Mosaic, so lane padding of the x tile cannot leak into the matmul.
    x = x_ref[...]

    # Layer 1: Linear + Tanh. w1 is (STATE_DIM, PAD); padded hidden cols -> tanh(0) = 0.
    h1 = jnp.tanh(
        jnp.dot(x, w1_ref[...], preferred_element_type=jnp.float32) + b1_ref[...]
    )
    # Layer 2: Linear + Tanh (padded cols stay exactly 0).
    h2 = jnp.tanh(
        jnp.dot(h1, w2_ref[...], preferred_element_type=jnp.float32) + b2_ref[...]
    )
    # Layer 3: Linear. The padded-column mask is baked into b3 (-1e30) and the
    # padded w3 columns are zero, so padded logits are exactly -1e30 and vanish
    # under exp() below -> log-softmax over the 19 real columns is exact.
    logits = jnp.dot(h2, w3_ref[...], preferred_element_type=jnp.float32) + b3_ref[...]

    # LogSoftmax(dim=-1), numerically stable.
    m = jnp.max(logits, axis=-1, keepdims=True)
    shifted = logits - m
    lse = jnp.log(jnp.sum(jnp.exp(shifted), axis=-1, keepdims=True))

    # Write only the 19 real columns (19-lane masked store; ~6.7x less writeback DMA).
    out_ref[...] = (shifted - lse)[:, :NUM_PRIM]


@functools.partial(jax.jit, static_argnames=("tile_b",))
def policy_forward(x, padded_params, *, tile_b=2048):
    """x: (batch, STATE_DIM) float32. Returns (batch, NUM_PRIM) log-probs."""
    w1, b1, w2, b2, w3, b3 = padded_params
    batch, sd = x.shape
    assert sd == STATE_DIM

    # Batch tiling: multiple of 8 (sublanes). Large tiles amortize the
    # ~0.35 us/step pipeline overhead; but keep >= 2 grid steps when the batch
    # allows so the "parallel" axis can shard across v7x's two TensorCores.
    rows8 = pl.cdiv(batch, 8) * 8
    tile_b = int(max(8, min((int(tile_b) // 8) * 8, rows8)))
    if rows8 > 8 and pl.cdiv(rows8, tile_b) < 2:
        tile_b = max(8, pl.cdiv(pl.cdiv(rows8, 2), 8) * 8)
    padded_batch = pl.cdiv(batch, tile_b) * tile_b

    # Only row-pad; no lane padding of the 20-wide features in the wrapper.
    if padded_batch != batch:
        x = jnp.pad(x, ((0, padded_batch - batch), (0, 0)))

    out = pl.pallas_call(
        _policy_kernel,
        out_shape=jax.ShapeDtypeStruct((padded_batch, NUM_PRIM), jnp.float32),
        grid_spec=pltpu.PrefetchScalarGridSpec(
            num_scalar_prefetch=0,
            grid=(padded_batch // tile_b,),
            in_specs=[
                pl.BlockSpec((tile_b, STATE_DIM), lambda i: (i, 0)),  # x tile (unpadded cols)
                pl.BlockSpec((STATE_DIM, PAD), lambda i: (0, 0)),     # w1 (resident)
                pl.BlockSpec((1, PAD), lambda i: (0, 0)),             # b1
                pl.BlockSpec((PAD, PAD), lambda i: (0, 0)),           # w2
                pl.BlockSpec((1, PAD), lambda i: (0, 0)),             # b2
                pl.BlockSpec((PAD, PAD), lambda i: (0, 0)),           # w3
                pl.BlockSpec((1, PAD), lambda i: (0, 0)),             # b3 (mask baked in)
            ],
            out_specs=pl.BlockSpec((tile_b, NUM_PRIM), lambda i: (i, 0)),
        ),
        compiler_params=pltpu.CompilerParams(
            dimension_semantics=("parallel",),  # shard batch across TCs on v7x
        ),
    )(x, w1, b1, w2, b2, w3, b3)

    return out if padded_batch == batch else out[:batch]


def init_params(key):
    """Logical (unpadded) parameters; weights stored as (in, out)."""
    k1, k2, k3, k4, k5, k6 = jax.random.split(key, 6)
    scale = 0.1
    w1 = scale * jax.random.normal(k1, (STATE_DIM, HIDDEN), jnp.float32)
    b1 = scale * jax.random.normal(k2, (1, HIDDEN), jnp.float32)
    w2 = scale * jax.random.normal(k3, (HIDDEN, HIDDEN), jnp.float32)
    b2 = scale * jax.random.normal(k4, (1, HIDDEN), jnp.float32)
    w3 = scale * jax.random.normal(k5, (HIDDEN, NUM_PRIM), jnp.float32)
    b3 = scale * jax.random.normal(k6, (1, NUM_PRIM), jnp.float32)
    return (w1, b1, w2, b2, w3, b3)


def pad_params(params):
    """Pad hidden/output dims to the lane width.

    w1 keeps its logical 20 input rows (the kernel contracts K=20 directly);
    b3's padded columns hold -1e30 so padded logits are masked for free.
    """
    w1, b1, w2, b2, w3, b3 = params

    w1p = jnp.zeros((STATE_DIM, PAD), jnp.float32).at[:, :HIDDEN].set(w1)
    b1p = jnp.zeros((1, PAD), jnp.float32).at[:, :HIDDEN].set(b1)
    w2p = jnp.zeros((PAD, PAD), jnp.float32).at[:HIDDEN, :HIDDEN].set(w2)
    b2p = jnp.zeros((1, PAD), jnp.float32).at[:, :HIDDEN].set(b2)
    w3p = jnp.zeros((PAD, PAD), jnp.float32).at[:HIDDEN, :NUM_PRIM].set(w3)
    b3p = jnp.full((1, PAD), -1e30, jnp.float32).at[:, :NUM_PRIM].set(b3)
    return (w1p, b1p, w2p, b2p, w3p, b3p)


def policy_forward_ref(x, params):
    """Plain-JAX reference of the same forward pass (for verification)."""
    w1, b1, w2, b2, w3, b3 = params
    h1 = jnp.tanh(x @ w1 + b1)
    h2 = jnp.tanh(h1 @ w2 + b2)
    logits = h2 @ w3 + b3
    return jax.nn.log_softmax(logits, axis=-1)


if __name__ == "__main__":
    key = jax.random.PRNGKey(0)
    kx, kx2, kp = jax.random.split(key, 3)

    params = init_params(kp)
    padded_params = pad_params(params)

    # Small primary test (single grid step).
    batch = 8
    x = jax.random.normal(kx, (batch, STATE_DIM), jnp.float32)
    out = jax.block_until_ready(policy_forward(x, padded_params))
    ref = policy_forward_ref(x, params)
    assert out.shape == (batch, NUM_PRIM)
    assert jnp.allclose(out, ref, atol=1e-5, rtol=1e-5), "mismatch vs reference"
    assert jnp.allclose(jnp.sum(jnp.exp(out), axis=-1), 1.0, atol=1e-5)

    # Secondary test: batch not a multiple of the tile -> multiple grid steps
    # plus row padding get exercised.
    batch2 = 50
    x2 = jax.random.normal(kx2, (batch2, STATE_DIM), jnp.float32)
    out2 = jax.block_until_ready(policy_forward(x2, padded_params, tile_b=16))
    ref2 = policy_forward_ref(x2, params)
    assert out2.shape == (batch2, NUM_PRIM)
    assert jnp.allclose(out2, ref2, atol=1e-5, rtol=1e-5), "mismatch vs reference (gridded)"
    assert jnp.allclose(jnp.sum(jnp.exp(out2), axis=-1), 1.0, atol=1e-5)

    print("KERNEL_OK")
</pallas_src>

<mosaic_0001>
module attributes {stable_mosaic.version = 11 : i64} {
  func.func @_policy_kernel(%arg0: i32, %arg1: memref<8x20xf32, #tpu.memory_space<vmem>>, %arg2: memref<20x128xf32, #tpu.memory_space<vmem>>, %arg3: memref<1x128xf32, #tpu.memory_space<vmem>>, %arg4: memref<128x128xf32, #tpu.memory_space<vmem>>, %arg5: memref<1x128xf32, #tpu.memory_space<vmem>>, %arg6: memref<128x128xf32, #tpu.memory_space<vmem>>, %arg7: memref<1x128xf32, #tpu.memory_space<vmem>>, %arg8: memref<8x19xf32, #tpu.memory_space<vmem>>) attributes {dimension_semantics = [#tpu.dimension_semantics<parallel>], iteration_bounds = array<i64: 1>, scalar_prefetch = 0 : i64, scratch_operands = 0 : i64, tpu.core_type = #tpu.core_type<tc>, window_params = [{transform_indices = @transform_0, window_bounds = array<i64: 8, 20>}, {pipeline_mode = #tpu.pipeline_mode<synchronous>, transform_indices = @transform_1, window_bounds = array<i64: 20, 128>}, {pipeline_mode = #tpu.pipeline_mode<synchronous>, transform_indices = @transform_2, window_bounds = array<i64: 1, 128>}, {pipeline_mode = #tpu.pipeline_mode<synchronous>, transform_indices = @transform_3, window_bounds = array<i64: 128, 128>}, {pipeline_mode = #tpu.pipeline_mode<synchronous>, transform_indices = @transform_4, window_bounds = array<i64: 1, 128>}, {pipeline_mode = #tpu.pipeline_mode<synchronous>, transform_indices = @transform_5, window_bounds = array<i64: 128, 128>}, {pipeline_mode = #tpu.pipeline_mode<synchronous>, transform_indices = @transform_6, window_bounds = array<i64: 1, 128>}, {transform_indices = @transform_7, window_bounds = array<i64: 8, 19>}]} {
    %c0 = arith.constant 0 : index
    %c0_0 = arith.constant 0 : index
    %0 = vector.load %arg1[%c0, %c0_0] : memref<8x20xf32, #tpu.memory_space<vmem>>, vector<8x20xf32>
    %c0_1 = arith.constant 0 : index
    %c0_2 = arith.constant 0 : index
    %1 = vector.load %arg2[%c0_1, %c0_2] : memref<20x128xf32, #tpu.memory_space<vmem>>, vector<20x128xf32>
    %cst = arith.constant dense<0.000000e+00> : vector<8x128xf32>
    %2 = tpu.matmul %0, %1, %cst {dimension_numbers = #tpu.dot_dimension_numbers<[1], [0], [0], [1], [0, 0, 1, 1], [], []>} : vector<8x20xf32>, vector<20x128xf32>, vector<8x128xf32> -> vector<8x128xf32>
    %c0_3 = arith.constant 0 : index
    %c0_4 = arith.constant 0 : index
    %3 = vector.load %arg3[%c0_3, %c0_4] : memref<1x128xf32, #tpu.memory_space<vmem>>, vector<1x128xf32>
    %4 = vector.broadcast %3 : vector<1x128xf32> to vector<8x128xf32>
    %5 = arith.addf %2, %4 : vector<8x128xf32>
    %6 = math.tanh %5 : vector<8x128xf32>
    %c0_5 = arith.constant 0 : index
    %c0_6 = arith.constant 0 : index
    %7 = vector.load %arg4[%c0_5, %c0_6] : memref<128x128xf32, #tpu.memory_space<vmem>>, vector<128x128xf32>
    %cst_7 = arith.constant dense<0.000000e+00> : vector<8x128xf32>
    %8 = tpu.matmul %6, %7, %cst_7 {dimension_numbers = #tpu.dot_dimension_numbers<[1], [0], [0], [1], [0, 0, 1, 1], [], []>} : vector<8x128xf32>, vector<128x128xf32>, vector<8x128xf32> -> vector<8x128xf32>
    %c0_8 = arith.constant 0 : index
    %c0_9 = arith.constant 0 : index
    %9 = vector.load %arg5[%c0_8, %c0_9] : memref<1x128xf32, #tpu.memory_space<vmem>>, vector<1x128xf32>
    %10 = vector.broadcast %9 : vector<1x128xf32> to vector<8x128xf32>
    %11 = arith.addf %8, %10 : vector<8x128xf32>
    %12 = math.tanh %11 : vector<8x128xf32>
    %c0_10 = arith.constant 0 : index
    %c0_11 = arith.constant 0 : index
    %13 = vector.load %arg6[%c0_10, %c0_11] : memref<128x128xf32, #tpu.memory_space<vmem>>, vector<128x128xf32>
    %cst_12 = arith.constant dense<0.000000e+00> : vector<8x128xf32>
    %14 = tpu.matmul %12, %13, %cst_12 {dimension_numbers = #tpu.dot_dimension_numbers<[1], [0], [0], [1], [0, 0, 1, 1], [], []>} : vector<8x128xf32>, vector<128x128xf32>, vector<8x128xf32> -> vector<8x128xf32>
    %c0_13 = arith.constant 0 : index
    %c0_14 = arith.constant 0 : index
    %15 = vector.load %arg7[%c0_13, %c0_14] : memref<1x128xf32, #tpu.memory_space<vmem>>, vector<1x128xf32>
    %16 = vector.broadcast %15 : vector<1x128xf32> to vector<8x128xf32>
    %17 = arith.addf %14, %16 : vector<8x128xf32>
    %cst_15 = arith.constant dense<0xFF800000> : vector<8xf32>
    %18 = vector.multi_reduction <maximumf>, %17, %cst_15 [1] : vector<8x128xf32> to vector<8xf32>
    %19 = vector.shape_cast %18 : vector<8xf32> to vector<8x1xf32>
    %20 = vector.broadcast %19 : vector<8x1xf32> to vector<8x128xf32>
    %21 = arith.subf %17, %20 : vector<8x128xf32>
    %22 = math.exp %21 : vector<8x128xf32>
    %cst_16 = arith.constant dense<0.000000e+00> : vector<8xf32>
    %23 = vector.multi_reduction <add>, %22, %cst_16 [1] : vector<8x128xf32> to vector<8xf32>
    %24 = vector.shape_cast %23 : vector<8xf32> to vector<8x1xf32>
    %25 = math.log %24 : vector<8x1xf32>
    %26 = vector.broadcast %25 : vector<8x1xf32> to vector<8x128xf32>
    %27 = arith.subf %21, %26 : vector<8x128xf32>
    %28 = vector.extract_strided_slice %27 {offsets = [0, 0], sizes = [8, 19], strides = [1, 1]} : vector<8x128xf32> to vector<8x19xf32>
    %c0_17 = arith.constant 0 : index
    %c0_18 = arith.constant 0 : index
    %29 = vector.load %arg8[%c0_17, %c0_18] : memref<8x19xf32, #tpu.memory_space<vmem>>, vector<8x19xf32>
    tpu.vector_store %arg8[%c0_17, %c0_18], %28 {strides = array<i32>} : memref<8x19xf32, #tpu.memory_space<vmem>>, vector<8x19xf32>,
    return
  }
  func.func @transform_0(%arg0: i32) -> (i32, i32) {
    %c0_i32 = arith.constant 0 : i32
    %c0_i32_0 = arith.constant 0 : i32
    return %arg0, %c0_i32 : i32, i32
  }
  func.func @transform_1(%arg0: i32) -> (i32, i32) {
    %c0_i32 = arith.constant 0 : i32
    %c0_i32_0 = arith.constant 0 : i32
    %c0_i32_1 = arith.constant 0 : i32
    return %c0_i32, %c0_i32_0 : i32, i32
  }
  func.func @transform_2(%arg0: i32) -> (i32, i32) {
    %c0_i32 = arith.constant 0 : i32
    %c0_i32_0 = arith.constant 0 : i32
    %c0_i32_1 = arith.constant 0 : i32
    return %c0_i32, %c0_i32_0 : i32, i32
  }
  func.func @transform_3(%arg0: i32) -> (i32, i32) {
    %c0_i32 = arith.constant 0 : i32
    %c0_i32_0 = arith.constant 0 : i32
    %c0_i32_1 = arith.constant 0 : i32
    return %c0_i32, %c0_i32_0 : i32, i32
  }
  func.func @transform_4(%arg0: i32) -> (i32, i32) {
    %c0_i32 = arith.constant 0 : i32
    %c0_i32_0 = arith.constant 0 : i32
    %c0_i32_1 = arith.constant 0 : i32
    return %c0_i32, %c0_i32_0 : i32, i32
  }
  func.func @transform_5(%arg0: i32) -> (i32, i32) {
    %c0_i32 = arith.constant 0 : i32
    %c0_i32_0 = arith.constant 0 : i32
    %c0_i32_1 = arith.constant 0 : i32
    return %c0_i32, %c0_i32_0 : i32, i32
  }
  func.func @transform_6(%arg0: i32) -> (i32, i32) {
    %c0_i32 = arith.constant 0 : i32
    %c0_i32_0 = arith.constant 0 : i32
    %c0_i32_1 = arith.constant 0 : i32
    return %c0_i32, %c0_i32_0 : i32, i32
  }
  func.func @transform_7(%arg0: i32) -> (i32, i32) {
    %c0_i32 = arith.constant 0 : i32
    %c0_i32_0 = arith.constant 0 : i32
    return %arg0, %c0_i32 : i32, i32
  }
}

</mosaic_0001>

<llo_original>
// kernel: policy_forward.1
$region0: #{policy_forward.1}
  #allocation0 [shape = 'u32[]', space=smem, size = 0x4, offset = 0x4, fixed_abs, tag = 'smem constant byte address 0x4 - core index']
  #allocation1 [shape = 'u32[72,128]{1,0:T(1,128)}', space=vmem, size = 0x9000, scoped, tag = 'internal scratch']
  %s0 = inlined_call_operand.hbm [shape: f32[8,20], index: 0, kind: input, shape index: {}]
  %s1 = inlined_call_operand.hbm [shape: f32[20,128], index: 1, kind: input, shape index: {}]
  %s2 = inlined_call_operand.vmem [shape: f32[1,128], index: 2, kind: input, shape index: {}]
  %s3 = inlined_call_operand.hbm [shape: f32[128,128], index: 3, kind: input, shape index: {}]
  %s4 = inlined_call_operand.vmem [shape: f32[1,128], index: 4, kind: input, shape index: {}]
  %s5 = inlined_call_operand.hbm [shape: f32[128,128], index: 5, kind: input, shape index: {}]
  %s6 = inlined_call_operand.vmem [shape: f32[1,128], index: 6, kind: input, shape index: {}]
  %s7 = inlined_call_operand.hbm [shape: f32[8,19], index: 7, kind: output, shape index: {}]
  %s8 = sld [smem:[#allocation0]]
  $region54: #{policy_forward.1} parent=0
    _
  %s10 = ssub.s32 1, %s8
  %s11 = scalar_select 0, %s10, %s8
  $region1: #{policy_forward.1} parent=0
    #allocation2 [shape = 'u8[4096]{0}', space=vmem, size = 0x1000, scoped, tag = 'input window, operand 0, single buffered']
    #allocation3 [shape = 's32[1]{0}', space=sflag, size = 0x4, scoped, tag = 'scoped memory for policy_forward.1']
    #allocation4 [shape = 's32[1]{0}', space=sflag, size = 0x4, scoped, tag = 'scoped memory for policy_forward.1']
    #allocation5 [shape = 'u8[12288]{0}', space=vmem, size = 0x3000, scoped, tag = 'input window, operand 1, single buffered']
    #allocation6 [shape = 's32[1]{0}', space=sflag, size = 0x4, scoped, tag = 'scoped memory for policy_forward.1']
    #allocation7 [shape = 'u8[65536]{0}', space=vmem, size = 0x10000, scoped, tag = 'input window, operand 3, single buffered']
    #allocation8 [shape = 'u8[65536]{0}', space=vmem, size = 0x10000, scoped, tag = 'input window, operand 5, single buffered']
    #allocation9 [shape = 's32[1]{0}', space=sflag, size = 0x4, scoped, tag = 'scoped memory for policy_forward.1']
    #allocation10 [shape = 'u8[4096]{0}', space=vmem, size = 0x1000, scoped, tag = 'output window, operand 0, single buffered']
    %12 = vsyncpa [#allocation3], 0
    %13 = vsyncpa [#allocation6], 0
    %14 = vsyncpa [#allocation9], 0
    %15 = vsyncpa [#allocation4], 0
    // Predicated region
    $region2: #{policy_forward.1} parent=1 // pred_check
      _
    $region3: #{policy_forward.1} parent=1 // pred_check_branch
      %17 = sbr.rel (0) target = $region5
    $region4: #{policy_forward.1} parent=1 // pred_region
      %19 = vsyncadd [#allocation3], 0
      %s21 = sshll.u32 %s0, 4
      %s22 = int_to_ptr.hbm [resolvable:$true] %s21
      %s23 = sshll.u32 [#allocation2], 4
      %s24 = int_to_ptr.vmem [resolvable:$true] %s23
      %26 = dma.hbm_to_vmem [thread:$0]  %s22, 128, %s24, [#allocation3]
    $region5: #{policy_forward.1} parent=1 // pred_fallthru
      _
    // Predicated region
    $region6: #{policy_forward.1} parent=1 // pred_check
      _
    $region7: #{policy_forward.1} parent=1 // pred_check_branch
      %28 = sbr.rel (0) target = $region9
    $region8: #{policy_forward.1} parent=1 // pred_region
      %30 = vsyncadd [#allocation6], 0
      %s31 = sshll.u32 %s1, 4
      %s32 = int_to_ptr.hbm [resolvable:$true] %s31
      %s33 = sshll.u32 [#allocation5], 4
      %s34 = int_to_ptr.vmem [resolvable:$true] %s33
      %39 = dma.hbm_to_vmem [thread:$0]  %s32, 384, %s34, [#allocation6], 128, 128, 8
    $region9: #{policy_forward.1} parent=1 // pred_fallthru
      _
    // Predicated region
    $region10: #{policy_forward.1} parent=1 // pred_check
      _
    $region11: #{policy_forward.1} parent=1 // pred_check_branch
      %41 = sbr.rel (0) target = $region13
    $region12: #{policy_forward.1} parent=1 // pred_region
      _
    $region13: #{policy_forward.1} parent=1 // pred_fallthru
      _
    // Predicated region
    $region14: #{policy_forward.1} parent=1 // pred_check
      _
    $region15: #{policy_forward.1} parent=1 // pred_check_branch
      %43 = sbr.rel (0) target = $region17
    $region16: #{policy_forward.1} parent=1 // pred_region
      %45 = vsyncadd [#allocation6], 0
      %s46 = sshll.u32 %s3, 4
      %s47 = int_to_ptr.hbm [resolvable:$true] %s46
      %s48 = sshll.u32 [#allocation7], 4
      %s49 = int_to_ptr.vmem [resolvable:$true] %s48
      %54 = dma.hbm_to_vmem [thread:$0]  %s47, 2048, %s49, [#allocation6], 128, 128, 8
    $region17: #{policy_forward.1} parent=1 // pred_fallthru
      _
    // Predicated region
    $region18: #{policy_forward.1} parent=1 // pred_check
      _
    $region19: #{policy_forward.1} parent=1 // pred_check_branch
      %56 = sbr.rel (0) target = $region21
    $region20: #{policy_forward.1} parent=1 // pred_region
      _
    $region21: #{policy_forward.1} parent=1 // pred_fallthru
      _
    // Predicated region
    $region22: #{policy_forward.1} parent=1 // pred_check
      _
    $region23: #{policy_forward.1} parent=1 // pred_check_branch
      %58 = sbr.rel (0) target = $region25
    $region24: #{policy_forward.1} parent=1 // pred_region
      %60 = vsyncadd [#allocation9], 0
      %s61 = sshll.u32 %s5, 4
      %s62 = int_to_ptr.hbm [resolvable:$true] %s61
      %s63 = sshll.u32 [#allocation8], 4
      %s64 = int_to_ptr.vmem [resolvable:$true] %s63
      %69 = dma.hbm_to_vmem [thread:$0]  %s62, 2048, %s64, [#allocation9], 128, 128, 8
    $region25: #{policy_forward.1} parent=1 // pred_fallthru
      _
    // Predicated region
    $region26: #{policy_forward.1} parent=1 // pred_check
      _
    $region27: #{policy_forward.1} parent=1 // pred_check_branch
      %71 = sbr.rel (0) target = $region29
    $region28: #{policy_forward.1} parent=1 // pred_region
      _
    $region29: #{policy_forward.1} parent=1 // pred_fallthru
      _
    // Predicated region
    $region30: #{policy_forward.1} parent=1 // pred_check
      _
    $region31: #{policy_forward.1} parent=1 // pred_check_branch
      %73 = sbr.rel (0) target = $region33
    $region32: #{policy_forward.1} parent=1 // pred_region
      %75 = dma.done [#allocation3], 128
    $region33: #{policy_forward.1} parent=1 // pred_fallthru
      _
    // Predicated region
    $region34: #{policy_forward.1} parent=1 // pred_check
      _
    $region35: #{policy_forward.1} parent=1 // pred_check_branch
      %77 = sbr.rel (0) target = $region37
    $region36: #{policy_forward.1} parent=1 // pred_region
      %79 = dma.done [#allocation6], 384
    $region37: #{policy_forward.1} parent=1 // pred_fallthru
      _
    // Predicated region
    $region38: #{policy_forward.1} parent=1 // pred_check
      _
    $region39: #{policy_forward.1} parent=1 // pred_check_branch
      %81 = sbr.rel (0) target = $region41
    $region40: #{policy_forward.1} parent=1 // pred_region
      %83 = dma.done [#allocation6], 2048
    $region41: #{policy_forward.1} parent=1 // pred_fallthru
      _
    // Predicated region
    $region42: #{policy_forward.1} parent=1 // pred_check
      _
    $region43: #{policy_forward.1} parent=1 // pred_check_branch
      %85 = sbr.rel (0) target = $region45
    $region44: #{policy_forward.1} parent=1 // pred_region
      %87 = dma.done [#allocation9], 2048
    $region45: #{policy_forward.1} parent=1 // pred_fallthru
      _
    %v88 = vld [vmem:[#allocation2] sm:$0xff]
    %v89 = vld [vmem:[#allocation5] sm:$0xff]
    %v90 = vld [vmem:[#allocation5 + $0x8] sm:$0xff]
    %v91 = vld [vmem:[#allocation5 + $0x10] sm:$0xf]
    %v92 = vld [vmem:[%s2] sm:$0x1]
    %v94 = vperm.slane %v92, 0
    %vm96 = vcmask 162816
    %v98 = vsel %vm96, %v88, 0
    %vm100 = vcmask 1043456
    %v102 = vsel %vm100, %v91, 0
    %104 = vmatpush.msra.mxu0 0.0
    %105 = vmatpush.msra.mxu0 0.0
    %106 = vmatpush.msra.mxu0 0.0
    %107 = vmatpush.msra.mxu0 0.0
    %108 = vmatpush.msra.mxu0 0.0
    %109 = vmatpush.msra.mxu0 0.0
    %110 = vmatpush.msra.mxu0 0.0
    %111 = vmatpush.msra.mxu0 0.0
    %112 = vmatpush.msra.mxu0 0.0
    %113 = vmatpush.msra.mxu0 0.0
    %114 = vmatpush.msra.mxu0 0.0
    %115 = vmatpush.msra.mxu0 0.0
    %116 = vmatpush.msra.mxu0 0.0
    %117 = vmatpush.msra.mxu0 %v102
    %118 = vmatpush.msra.mxu0 %v90
    %119 = vmatpush.msra.mxu0 %v89
    %120 = vmatmul.f32.gmra.mxu0 %v98
    %v121 = vpop.f32.mrf.mxu0
    %v122 = vadd.f32 %v94, %v121
    %123 = vdwg.mxu0
    %v124 = vtanh.pop %v122
    %v125 = vld [vmem:[#allocation7] sm:$0xff]
    %v126 = vld [vmem:[#allocation7 + $0x8] sm:$0xff]
    %v127 = vld [vmem:[#allocation7 + $0x10] sm:$0xff]
    %v128 = vld [vmem:[#allocation7 + $0x18] sm:$0xff]
    %v129 = vld [vmem:[#allocation7 + $0x20] sm:$0xff]
    %v130 = vld [vmem:[#allocation7 + $0x28] sm:$0xff]
    %v131 = vld [vmem:[#allocation7 + $0x30] sm:$0xff]
    %v132 = vld [vmem:[#allocation7 + $0x38] sm:$0xff]
    %v133 = vld [vmem:[#allocation7 + $0x40] sm:$0xff]
    %v134 = vld [vmem:[#allocation7 + $0x48] sm:$0xff]
    %v135 = vld [vmem:[#allocation7 + $0x50] sm:$0xff]
    %v136 = vld [vmem:[#allocation7 + $0x58] sm:$0xff]
    %v137 = vld [vmem:[#allocation7 + $0x60] sm:$0xff]
    %v138 = vld [vmem:[#allocation7 + $0x68] sm:$0xff]
    %v139 = vld [vmem:[#allocation7 + $0x70] sm:$0xff]
    %v140 = vld [vmem:[#allocation7 + $0x78] sm:$0xff]
    %v141 = vld [vmem:[%s4] sm:$0x1]
    %v143 = vperm.slane %v141, 0
    %145 = vmatpush.msra.mxu0 %v140
    %146 = vmatpush.msra.mxu0 %v139
    %147 = vmatpush.msra.mxu0 %v138
    %148 = vmatpush.msra.mxu0 %v137
    %149 = vmatpush.msra.mxu0 %v136
    %150 = vmatpush.msra.mxu0 %v135
    %151 = vmatpush.msra.mxu0 %v134
    %152 = vmatpush.msra.mxu0 %v133
    %153 = vmatpush.msra.mxu0 %v132
    %154 = vmatpush.msra.mxu0 %v131
    %155 = vmatpush.msra.mxu0 %v130
    %156 = vmatpush.msra.mxu0 %v129
    %157 = vmatpush.msra.mxu0 %v128
    %158 = vmatpush.msra.mxu0 %v127
    %159 = vmatpush.msra.mxu0 %v126
    %160 = vmatpush.msra.mxu0 %v125
    %161 = vmatmul.f32.gmra.mxu0 %v124
    %v162 = vpop.f32.mrf.mxu0
    %v163 = vadd.f32 %v143, %v162
    %164 = vdwg.mxu0
    %v165 = vtanh.pop %v163
    %v166 = vld [vmem:[#allocation8] sm:$0xff]
    %v167 = vld [vmem:[#allocation8 + $0x8] sm:$0xff]
    %v168 = vld [vmem:[#allocation8 + $0x10] sm:$0xff]
    %v169 = vld [vmem:[#allocation8 + $0x18] sm:$0xff]
    %v170 = vld [vmem:[#allocation8 + $0x20] sm:$0xff]
    %v171 = vld [vmem:[#allocation8 + $0x28] sm:$0xff]
    %v172 = vld [vmem:[#allocation8 + $0x30] sm:$0xff]
    %v173 = vld [vmem:[#allocation8 + $0x38] sm:$0xff]
    %v174 = vld [vmem:[#allocation8 + $0x40] sm:$0xff]
    %v175 = vld [vmem:[#allocation8 + $0x48] sm:$0xff]
    %v176 = vld [vmem:[#allocation8 + $0x50] sm:$0xff]
    %v177 = vld [vmem:[#allocation8 + $0x58] sm:$0xff]
    %v178 = vld [vmem:[#allocation8 + $0x60] sm:$0xff]
    %v179 = vld [vmem:[#allocation8 + $0x68] sm:$0xff]
    %v180 = vld [vmem:[#allocation8 + $0x70] sm:$0xff]
    %v181 = vld [vmem:[#allocation8 + $0x78] sm:$0xff]
    %v182 = vld [vmem:[%s6] sm:$0x1]
    %v184 = vperm.slane %v182, 0
    %186 = vmatpush.msra.mxu0 %v181
    %187 = vmatpush.msra.mxu0 %v180
    %188 = vmatpush.msra.mxu0 %v179
    %189 = vmatpush.msra.mxu0 %v178
    %190 = vmatpush.msra.mxu0 %v177
    %191 = vmatpush.msra.mxu0 %v176
    %192 = vmatpush.msra.mxu0 %v175
    %193 = vmatpush.msra.mxu0 %v174
    %194 = vmatpush.msra.mxu0 %v173
    %195 = vmatpush.msra.mxu0 %v172
    %196 = vmatpush.msra.mxu0 %v171
    %197 = vmatpush.msra.mxu0 %v170
    %198 = vmatpush.msra.mxu0 %v169
    %199 = vmatpush.msra.mxu0 %v168
    %200 = vmatpush.msra.mxu0 %v167
    %201 = vmatpush.msra.mxu0 %v166
    %202 = vmatmul.f32.gmra.mxu0 %v165
    %v203 = vpop.f32.mrf.mxu0
    %v204 = vadd.f32 %v184, %v203
    %205 = vdwg.mxu0
    %206 = vmax.xlane.f32.xlu0 %v204
    %v207 = vpop.xlane.xlu0 %206
    %v208 = vsub.f32 %v204, %v207
    %v209 = vmul.f32 %v208, 1.442695
    %v210 = vpow.pop %v209
    %211 = vadd.xlane.f32.xlu0 %v210
    %v212 = vpop.xlane.xlu0 %211
    %v213 = vlog2.pop %v212
    %v214 = vmul.f32 %v213, 0.6931472
    %v215 = vsub.f32 %v208, %v214
    %vm216 = vcmask 154624
    %217 = vst.msk [vmem:[#allocation10] sm:$0xff] %vm216, %v215
    // Predicated region
    $region46: #{policy_forward.1} parent=1 // pred_check
      _
    $region47: #{policy_forward.1} parent=1 // pred_check_branch
      %219 = sbr.rel (0) target = $region49
    $region48: #{policy_forward.1} parent=1 // pred_region
      %221 = vsyncadd [#allocation4], 0
      %s223 = sshll.u32 [#allocation10], 4
      %s224 = int_to_ptr.vmem [resolvable:$true] %s223
      %s225 = sshll.u32 %s7, 4
      %s226 = int_to_ptr.hbm [resolvable:$true] %s225
      %228 = dma.vmem_to_hbm [thread:$0]  %s224, 128, %s226, [#allocation4]
    $region49: #{policy_forward.1} parent=1 // pred_fallthru
      _
    // Predicated region
    $region50: #{policy_forward.1} parent=1 // pred_check
      _
    $region51: #{policy_forward.1} parent=1 // pred_check_branch
      %230 = sbr.rel (0) target = $region53
    $region52: #{policy_forward.1} parent=1 // pred_region
      %232 = dma.done [#allocation4], 128
    $region53: #{policy_forward.1} parent=1 // pred_fallthru
      _
    %233 = vsyncpa [#allocation3], 1
    %234 = vsyncpa [#allocation6], 1
    %235 = vsyncpa [#allocation9], 1
    %236 = vsyncpa [#allocation4], 1

</llo_original>
